<compile_context>
chip_gen: v7x
topology: tpu7x:2x2x1
jax: 0.10.0
libtpu: 0.0.40
codegen_flags: <defaults>
</compile_context>

<pallas_src>
import jax
import jax.numpy as jnp
from jax.experimental import pallas as pl
from jax.experimental.pallas import tpu as pltpu

LANE = 128      # lane width (last dim)
SUBLANE = 8     # sublane width (second-to-last dim)


def _round_up(x, m):
    return (x + m - 1) // m * m


# --------------------------------------------------------------------------
# Kernel: full actor MLP hot path for one batch tile.
#   3 MXU matmuls (bf16 operands, f32 accumulate) + f32 bias adds + 2 ReLUs.
# --------------------------------------------------------------------------
def actor_mu_kernel(x_ref, w1_ref, b1_ref, w2_ref, b2_ref, w3_ref, b3_ref,
                    mu_ref):
    # Matmul operands in bf16 (MXU-native); bias/ReLU stay f32 (v5e-safe VPU).
    x = x_ref[...].astype(jnp.bfloat16)

    h1 = jnp.dot(x, w1_ref[...], preferred_element_type=jnp.float32) + b1_ref[...]
    h1 = jnp.maximum(h1, 0.0)                                   # F.relu

    h2 = jnp.dot(h1.astype(jnp.bfloat16), w2_ref[...],
                 preferred_element_type=jnp.float32) + b2_ref[...]
    h2 = jnp.maximum(h2, 0.0)                                   # F.relu

    mu = jnp.dot(h2.astype(jnp.bfloat16), w3_ref[...],
                 preferred_element_type=jnp.float32) + b3_ref[...]
    mu_ref[...] = mu.astype(mu_ref.dtype)


# --------------------------------------------------------------------------
# Parameter handling
# --------------------------------------------------------------------------
def init_actor_params(key, input_dim, action_dim, fc1_size, fc2_size):
    """PyTorch nn.Linear-style init (uniform +-1/sqrt(fan_in)); weights stored
    as [in, out]; logstds initialised to 0.1 like the module."""
    def linear_init(k, fan_in, fan_out):
        kw, kb = jax.random.split(k)
        bound = 1.0 / jnp.sqrt(float(fan_in))
        w = jax.random.uniform(kw, (fan_in, fan_out), jnp.float32, -bound, bound)
        b = jax.random.uniform(kb, (1, fan_out), jnp.float32, -bound, bound)
        return w, b

    k1, k2, k3 = jax.random.split(key, 3)
    w1, b1 = linear_init(k1, input_dim, fc1_size)
    w2, b2 = linear_init(k2, fc1_size, fc2_size)
    w3, b3 = linear_init(k3, fc2_size, action_dim)
    logstds = jnp.full((action_dim,), 0.1, jnp.float32)
    return (w1, b1, w2, b2, w3, b3), logstds


def pad_actor_params(params):
    """Lane-pad only the HIDDEN feature axes (fc1/fc2 outputs) to 128.

    * w1 keeps its logical K (= input_dim) so the state needs no feature pad.
    * w3/b3 keep their logical N (= action_dim) so the mu write is unpadded.
    * Hidden pads are exact: padded hidden units are relu(0 + 0) = 0 and hit
      zero weight rows downstream.
    * Weights are stored bf16 (MXU operands); biases stay f32 (VPU adds).
    Done ONCE at init time, not per call.
    """
    w1, b1, w2, b2, w3, b3 = params
    in_dim, fc1 = w1.shape
    _, fc2 = w2.shape
    _, act = w3.shape
    fc1_p, fc2_p = _round_up(fc1, LANE), _round_up(fc2, LANE)

    w1p = jnp.zeros((in_dim, fc1_p), jnp.float32).at[:, :fc1].set(w1)
    b1p = jnp.zeros((1, fc1_p), jnp.float32).at[:, :fc1].set(b1)
    w2p = jnp.zeros((fc1_p, fc2_p), jnp.float32).at[:fc1, :fc2].set(w2)
    b2p = jnp.zeros((1, fc2_p), jnp.float32).at[:, :fc2].set(b2)
    w3p = jnp.zeros((fc2_p, act), jnp.float32).at[:fc2, :].set(w3)
    b3p = b3.astype(jnp.float32)

    return (w1p.astype(jnp.bfloat16), b1p,
            w2p.astype(jnp.bfloat16), b2p,
            w3p.astype(jnp.bfloat16), b3p)


def compute_sigma(logstds):
    """sigma = clamp(exp(logstds), 0.001, 50) — parameter-only, hoisted out of
    the per-call forward path."""
    return jnp.clip(jnp.exp(logstds), 0.001, 50.0)


# --------------------------------------------------------------------------
# Forward wrapper
# --------------------------------------------------------------------------
def actor_forward(state, padded_params, *, block_batch=512):
    """Returns mu [batch, action_dim] (the Normal's mean)."""
    w1, b1, w2, b2, w3, b3 = padded_params
    batch, in_dim = state.shape
    assert in_dim == w1.shape[0], (in_dim, w1.shape)
    h1_p = w1.shape[1]
    h2_p = w2.shape[1]
    action_dim = w3.shape[1]

    # Batch tiling:
    #   * multiple of 8 sublanes,
    #   * capped at block_batch (default 512 — even a 1024-row f32 tile is only
    #     a few MiB, well inside every generation's scoped VMEM),
    #   * >=2 grid steps once batch >= 16 so both v7x TensorCores get work.
    b_pad = _round_up(batch, SUBLANE)
    if batch >= 16:
        tb = min(block_batch, _round_up(pl.cdiv(b_pad, 2), SUBLANE))
    else:
        tb = b_pad
    b_pad = _round_up(b_pad, tb)

    x = state.astype(jnp.float32)
    if b_pad != batch:
        # Only the batch axis is padded (feature axis streams unpadded).
        x = jnp.zeros((b_pad, in_dim), jnp.float32).at[:batch].set(x)

    grid = (b_pad // tb,)

    tiled_in = pl.BlockSpec((tb, in_dim), lambda i: (i, 0))
    tiled_out = pl.BlockSpec((tb, action_dim), lambda i: (i, 0))
    resident = lambda arr: pl.BlockSpec(arr.shape, lambda i: (0, 0))

    # Cost of the work the kernel actually performs (no 128-padded K/N).
    flops = 2 * b_pad * (in_dim * h1_p + h1_p * h2_p + h2_p * action_dim)
    bytes_accessed = (x.size * 4                      # state (f32)
                      + (w1.size + w2.size + w3.size) * 2   # bf16 weights
                      + (b1.size + b2.size + b3.size) * 4   # f32 biases
                      + b_pad * action_dim * 4)             # mu (f32)

    mu_pad = pl.pallas_call(
        actor_mu_kernel,
        out_shape=jax.ShapeDtypeStruct((b_pad, action_dim), jnp.float32),
        grid=grid,
        in_specs=[
            tiled_in,
            resident(w1), resident(b1),
            resident(w2), resident(b2),
            resident(w3), resident(b3),
        ],
        out_specs=tiled_out,
        compiler_params=pltpu.CompilerParams(
            dimension_semantics=("parallel",)),
        cost_estimate=pl.CostEstimate(
            flops=flops, transcendentals=0, bytes_accessed=bytes_accessed),
    )(x, w1, b1, w2, b2, w3, b3)

    return mu_pad if b_pad == batch else mu_pad[:batch]


# --------------------------------------------------------------------------
# Pure-JAX reference (unpadded f32 params) for correctness check
# --------------------------------------------------------------------------
def actor_reference(state, params, logstds):
    w1, b1, w2, b2, w3, b3 = params
    h1 = jnp.maximum(state @ w1 + b1, 0.0)
    h2 = jnp.maximum(h1 @ w2 + b2, 0.0)
    mu = h2 @ w3 + b3
    sigma = jnp.clip(jnp.exp(logstds), 0.001, 50.0)
    return mu, sigma


if __name__ == "__main__":
    # Small shapes consistent with the module: state = [batch, input_dim]
    batch = 32
    input_dim = 8
    action_dim = 4
    fc1_size = 32
    fc2_size = 32

    key = jax.random.PRNGKey(0)
    k_state, k_params = jax.random.split(key)

    state = jax.random.normal(k_state, (batch, input_dim), jnp.float32)
    raw_params, logstds = init_actor_params(
        k_params, input_dim, action_dim, fc1_size, fc2_size)
    padded_params = pad_actor_params(raw_params)

    # sigma is parameter-only: computed once, outside the per-step forward.
    sigma = compute_sigma(logstds)

    mu = actor_forward(state, padded_params)
    mu = jax.block_until_ready(mu)
    sigma = jax.block_until_ready(sigma)

    mu_ref, sigma_ref = actor_reference(state, raw_params, logstds)

    assert mu.shape == (batch, action_dim), mu.shape
    assert sigma.shape == (action_dim,), sigma.shape
    # bf16 matmul operands (f32 accumulation): allow ~1e-2 relative difference.
    assert jnp.allclose(mu, mu_ref, atol=3e-2, rtol=3e-2), "mu mismatch vs reference"
    assert jnp.allclose(sigma, sigma_ref, atol=1e-6, rtol=1e-6), "sigma mismatch"

    print("KERNEL_OK")
</pallas_src>

<mosaic_0001>
module attributes {stable_mosaic.version = 11 : i64} {
  func.func @actor_mu_kernel(%arg0: i32, %arg1: memref<16x8xf32, #tpu.memory_space<vmem>>, %arg2: memref<8x128xbf16, #tpu.memory_space<vmem>>, %arg3: memref<1x128xf32, #tpu.memory_space<vmem>>, %arg4: memref<128x128xbf16, #tpu.memory_space<vmem>>, %arg5: memref<1x128xf32, #tpu.memory_space<vmem>>, %arg6: memref<128x4xbf16, #tpu.memory_space<vmem>>, %arg7: memref<1x4xf32, #tpu.memory_space<vmem>>, %arg8: memref<16x4xf32, #tpu.memory_space<vmem>>) attributes {dimension_semantics = [#tpu.dimension_semantics<parallel>], iteration_bounds = array<i64: 2>, scalar_prefetch = 0 : i64, scratch_operands = 0 : i64, tpu.core_type = #tpu.core_type<tc>, window_params = [{transform_indices = @transform_0, window_bounds = array<i64: 16, 8>}, {pipeline_mode = #tpu.pipeline_mode<synchronous>, transform_indices = @transform_1, window_bounds = array<i64: 8, 128>}, {pipeline_mode = #tpu.pipeline_mode<synchronous>, transform_indices = @transform_2, window_bounds = array<i64: 1, 128>}, {pipeline_mode = #tpu.pipeline_mode<synchronous>, transform_indices = @transform_3, window_bounds = array<i64: 128, 128>}, {pipeline_mode = #tpu.pipeline_mode<synchronous>, transform_indices = @transform_4, window_bounds = array<i64: 1, 128>}, {pipeline_mode = #tpu.pipeline_mode<synchronous>, transform_indices = @transform_5, window_bounds = array<i64: 128, 4>}, {pipeline_mode = #tpu.pipeline_mode<synchronous>, transform_indices = @transform_6, window_bounds = array<i64: 1, 4>}, {transform_indices = @transform_7, window_bounds = array<i64: 16, 4>}]} {
    %c0 = arith.constant 0 : index
    %c0_0 = arith.constant 0 : index
    %0 = vector.load %arg1[%c0, %c0_0] : memref<16x8xf32, #tpu.memory_space<vmem>>, vector<16x8xf32>
    %1 = arith.truncf %0 : vector<16x8xf32> to vector<16x8xbf16>
    %c0_1 = arith.constant 0 : index
    %c0_2 = arith.constant 0 : index
    %2 = vector.load %arg2[%c0_1, %c0_2] : memref<8x128xbf16, #tpu.memory_space<vmem>>, vector<8x128xbf16>
    %cst = arith.constant dense<0.000000e+00> : vector<16x128xf32>
    %3 = tpu.matmul %1, %2, %cst {dimension_numbers = #tpu.dot_dimension_numbers<[1], [0], [0], [1], [0, 0, 1, 1], [], []>} : vector<16x8xbf16>, vector<8x128xbf16>, vector<16x128xf32> -> vector<16x128xf32>
    %c0_3 = arith.constant 0 : index
    %c0_4 = arith.constant 0 : index
    %4 = vector.load %arg3[%c0_3, %c0_4] : memref<1x128xf32, #tpu.memory_space<vmem>>, vector<1x128xf32>
    %5 = vector.broadcast %4 : vector<1x128xf32> to vector<16x128xf32>
    %6 = arith.addf %3, %5 : vector<16x128xf32>
    %cst_5 = arith.constant 0.000000e+00 : f32
    %7 = vector.broadcast %cst_5 : f32 to vector<16x128xf32>
    %8 = arith.maximumf %6, %7 : vector<16x128xf32>
    %9 = arith.truncf %8 : vector<16x128xf32> to vector<16x128xbf16>
    %c0_6 = arith.constant 0 : index
    %c0_7 = arith.constant 0 : index
    %10 = vector.load %arg4[%c0_6, %c0_7] : memref<128x128xbf16, #tpu.memory_space<vmem>>, vector<128x128xbf16>
    %cst_8 = arith.constant dense<0.000000e+00> : vector<16x128xf32>
    %11 = tpu.matmul %9, %10, %cst_8 {dimension_numbers = #tpu.dot_dimension_numbers<[1], [0], [0], [1], [0, 0, 1, 1], [], []>} : vector<16x128xbf16>, vector<128x128xbf16>, vector<16x128xf32> -> vector<16x128xf32>
    %c0_9 = arith.constant 0 : index
    %c0_10 = arith.constant 0 : index
    %12 = vector.load %arg5[%c0_9, %c0_10] : memref<1x128xf32, #tpu.memory_space<vmem>>, vector<1x128xf32>
    %13 = vector.broadcast %12 : vector<1x128xf32> to vector<16x128xf32>
    %14 = arith.addf %11, %13 : vector<16x128xf32>
    %cst_11 = arith.constant 0.000000e+00 : f32
    %15 = vector.broadcast %cst_11 : f32 to vector<16x128xf32>
    %16 = arith.maximumf %14, %15 : vector<16x128xf32>
    %17 = arith.truncf %16 : vector<16x128xf32> to vector<16x128xbf16>
    %c0_12 = arith.constant 0 : index
    %c0_13 = arith.constant 0 : index
    %18 = vector.load %arg6[%c0_12, %c0_13] : memref<128x4xbf16, #tpu.memory_space<vmem>>, vector<128x4xbf16>
    %cst_14 = arith.constant dense<0.000000e+00> : vector<16x4xf32>
    %19 = tpu.matmul %17, %18, %cst_14 {dimension_numbers = #tpu.dot_dimension_numbers<[1], [0], [0], [1], [0, 0, 1, 1], [], []>} : vector<16x128xbf16>, vector<128x4xbf16>, vector<16x4xf32> -> vector<16x4xf32>
    %c0_15 = arith.constant 0 : index
    %c0_16 = arith.constant 0 : index
    %20 = vector.load %arg7[%c0_15, %c0_16] : memref<1x4xf32, #tpu.memory_space<vmem>>, vector<1x4xf32>
    %21 = vector.broadcast %20 : vector<1x4xf32> to vector<16x4xf32>
    %22 = arith.addf %19, %21 : vector<16x4xf32>
    %c0_17 = arith.constant 0 : index
    %c0_18 = arith.constant 0 : index
    %23 = vector.load %arg8[%c0_17, %c0_18] : memref<16x4xf32, #tpu.memory_space<vmem>>, vector<16x4xf32>
    tpu.vector_store %arg8[%c0_17, %c0_18], %22 {strides = array<i32>} : memref<16x4xf32, #tpu.memory_space<vmem>>, vector<16x4xf32>,
    return
  }
  func.func @transform_0(%arg0: i32) -> (i32, i32) {
    %c0_i32 = arith.constant 0 : i32
    %c0_i32_0 = arith.constant 0 : i32
    return %arg0, %c0_i32 : i32, i32
  }
  func.func @transform_1(%arg0: i32) -> (i32, i32) {
    %c0_i32 = arith.constant 0 : i32
    %c0_i32_0 = arith.constant 0 : i32
    %c0_i32_1 = arith.constant 0 : i32
    return %c0_i32, %c0_i32_0 : i32, i32
  }
  func.func @transform_2(%arg0: i32) -> (i32, i32) {
    %c0_i32 = arith.constant 0 : i32
    %c0_i32_0 = arith.constant 0 : i32
    %c0_i32_1 = arith.constant 0 : i32
    return %c0_i32, %c0_i32_0 : i32, i32
  }
  func.func @transform_3(%arg0: i32) -> (i32, i32) {
    %c0_i32 = arith.constant 0 : i32
    %c0_i32_0 = arith.constant 0 : i32
    %c0_i32_1 = arith.constant 0 : i32
    return %c0_i32, %c0_i32_0 : i32, i32
  }
  func.func @transform_4(%arg0: i32) -> (i32, i32) {
    %c0_i32 = arith.constant 0 : i32
    %c0_i32_0 = arith.constant 0 : i32
    %c0_i32_1 = arith.constant 0 : i32
    return %c0_i32, %c0_i32_0 : i32, i32
  }
  func.func @transform_5(%arg0: i32) -> (i32, i32) {
    %c0_i32 = arith.constant 0 : i32
    %c0_i32_0 = arith.constant 0 : i32
    %c0_i32_1 = arith.constant 0 : i32
    return %c0_i32, %c0_i32_0 : i32, i32
  }
  func.func @transform_6(%arg0: i32) -> (i32, i32) {
    %c0_i32 = arith.constant 0 : i32
    %c0_i32_0 = arith.constant 0 : i32
    %c0_i32_1 = arith.constant 0 : i32
    return %c0_i32, %c0_i32_0 : i32, i32
  }
  func.func @transform_7(%arg0: i32) -> (i32, i32) {
    %c0_i32 = arith.constant 0 : i32
    %c0_i32_0 = arith.constant 0 : i32
    return %arg0, %c0_i32 : i32, i32
  }
}

</mosaic_0001>

<llo_original>
// kernel: tpu_custom_call.1
$region0: #{tpu_custom_call.1}
  #allocation0 [shape = 'u32[]', space=smem, size = 0x4, offset = 0x4, fixed_abs, tag = 'smem constant byte address 0x4 - core index']
  #allocation1 [shape = 'u32[144,128]{1,0:T(1,128)}', space=vmem, size = 0x12000, scoped, tag = 'internal scratch']
  %s0 = inlined_call_operand.vmem [shape: f32[32,8], index: 0, kind: input, shape index: {}]
  %s1 = inlined_call_operand.vmem [shape: bf16[8,128], index: 1, kind: input, shape index: {}]
  %s2 = inlined_call_operand.vmem [shape: f32[1,128], index: 2, kind: input, shape index: {}]
  %s3 = inlined_call_operand.vmem [shape: bf16[128,128], index: 3, kind: input, shape index: {}]
  %s4 = inlined_call_operand.vmem [shape: f32[1,128], index: 4, kind: input, shape index: {}]
  %s5 = inlined_call_operand.vmem [shape: bf16[128,4], index: 5, kind: input, shape index: {}]
  %s6 = inlined_call_operand.vmem [shape: f32[1,4], index: 6, kind: input, shape index: {}]
  %s7 = inlined_call_operand.vmem [shape: f32[32,4], index: 7, kind: output, shape index: {}]
  %s8 = sld [smem:[#allocation0]]
  $region61: #{tpu_custom_call.1} parent=0
    _
  %s10 = ssub.s32 1, %s8
  %s11 = scalar_select 0, %s10, %s8
  loop: start=0, step=1, limit=4
  $region2: #{tpu_custom_call.1} parent=0 // loop_pre_header
    _
  $region3: #{tpu_custom_call.1} parent=0 // loop_header
    %s13 = sphi 0, %s17
    %p14 = scmp.ge.s32.totalorder %s13, 4
    %s23 = sphi 0, %s25
    %s26 = sphi 0, %s23
    %s27 = sphi 0, %s26
    %s43 = sphi 0, %s27
    %s47 = sphi 0, %s47
    %s49 = sphi 0, %s47
    %s50 = sphi 0, %s49
    %s64 = sphi 0, %s50
    %s68 = sphi 0, %s68
    %s70 = sphi 0, %s68
    %s71 = sphi 0, %s70
    %s85 = sphi 0, %s71
    %s89 = sphi 0, %s89
    %s91 = sphi 0, %s89
    %s92 = sphi 0, %s91
    %s106 = sphi 0, %s92
    %s110 = sphi 0, %s110
    %s112 = sphi 0, %s110
    %s113 = sphi 0, %s112
    %s127 = sphi 0, %s113
    %s131 = sphi 0, %s131
    %s133 = sphi 0, %s131
    %s134 = sphi 0, %s133
    %s148 = sphi 0, %s134
    %s152 = sphi 0, %s152
    %s154 = sphi 0, %s152
    %s155 = sphi 0, %s154
    %s169 = sphi 0, %s155
    %s175 = sphi 0, %s177
    %s178 = sphi 0, %s175
    %s179 = sphi 0, %s178
    %s195 = sphi 0, %s179
  $region4: #{tpu_custom_call.1} parent=0 // loop_header_branch
    %16 = sbr.rel (%p14) target = $region8
  $region5: #{tpu_custom_call.1} parent=0 // loop_body
    %s18 = ssub.s32 %s13, 1
    %s19 = ssub.s32 %s13, 2
    %s20 = sadd.s32 %s13, 1
    %s21 = ssub.s32 %s13, %s20
    %p22 = scmp.eq.s32.totalorder %s21, 0
    %s24 = sadd.s32 %s23, 1
    %s25 = scalar_select %p22, %s23, %s24
    %p28 = pneg %p22
    %p29 = scmp.eq.s32.totalorder %s13, 1
    %p30 = por %p28, %p29
    %p31 = scmp.ne.s32.totalorder %s23, %s26
    %p32 = scmp.eq.s32.totalorder %s13, 0
    %p33 = por %p31, %p32
    %p34 = scmp.ne.s32.totalorder %s23, %s26
    %p35 = scmp.eq.s32.totalorder %s18, 1
    %p36 = por %p34, %p35
    %p37 = scmp.ne.s32.totalorder %s26, %s27
    %p38 = scmp.eq.s32.totalorder %s18, 0
    %p39 = por %p37, %p38
    %p40 = scmp.ne.s32.totalorder %s26, %s27
    %p41 = scmp.eq.s32.totalorder %s19, 1
    %p42 = por %p40, %p41
    %p44 = scmp.ne.s32.totalorder %s27, %s43
    %p45 = scmp.eq.s32.totalorder %s19, 0
    %p46 = por %p44, %p45
    %s48 = sadd.s32 %s47, 1
    %p51 = scmp.eq.s32.totalorder %s13, 1
    %p52 = scmp.ne.s32.totalorder %s47, %s49
    %p53 = scmp.eq.s32.totalorder %s13, 0
    %p54 = por %p52, %p53
    %p55 = scmp.ne.s32.totalorder %s47, %s49
    %p56 = scmp.eq.s32.totalorder %s18, 1
    %p57 = por %p55, %p56
    %p58 = scmp.ne.s32.totalorder %s49, %s50
    %p59 = scmp.eq.s32.totalorder %s18, 0
    %p60 = por %p58, %p59
    %p61 = scmp.ne.s32.totalorder %s49, %s50
    %p62 = scmp.eq.s32.totalorder %s19, 1
    %p63 = por %p61, %p62
    %p65 = scmp.ne.s32.totalorder %s50, %s64
    %p66 = scmp.eq.s32.totalorder %s19, 0
    %p67 = por %p65, %p66
    %s69 = sadd.s32 %s68, 1
    %p72 = scmp.eq.s32.totalorder %s13, 1
    %p73 = scmp.ne.s32.totalorder %s68, %s70
    %p74 = scmp.eq.s32.totalorder %s13, 0
    %p75 = por %p73, %p74
    %p76 = scmp.ne.s32.totalorder %s68, %s70
    %p77 = scmp.eq.s32.totalorder %s18, 1
    %p78 = por %p76, %p77
    %p79 = scmp.ne.s32.totalorder %s70, %s71
    %p80 = scmp.eq.s32.totalorder %s18, 0
    %p81 = por %p79, %p80
    %p82 = scmp.ne.s32.totalorder %s70, %s71
    %p83 = scmp.eq.s32.totalorder %s19, 1
    %p84 = por %p82, %p83
    %p86 = scmp.ne.s32.totalorder %s71, %s85
    %p87 = scmp.eq.s32.totalorder %s19, 0
    %p88 = por %p86, %p87
    %s90 = sadd.s32 %s89, 1
    %p93 = scmp.eq.s32.totalorder %s13, 1
    %p94 = scmp.ne.s32.totalorder %s89, %s91
    %p95 = scmp.eq.s32.totalorder %s13, 0
    %p96 = por %p94, %p95
    %p97 = scmp.ne.s32.totalorder %s89, %s91
    %p98 = scmp.eq.s32.totalorder %s18, 1
    %p99 = por %p97, %p98
    %p100 = scmp.ne.s32.totalorder %s91, %s92
    %p101 = scmp.eq.s32.totalorder %s18, 0
    %p102 = por %p100, %p101
    %p103 = scmp.ne.s32.totalorder %s91, %s92
    %p104 = scmp.eq.s32.totalorder %s19, 1
    %p105 = por %p103, %p104
    %p107 = scmp.ne.s32.totalorder %s92, %s106
    %p108 = scmp.eq.s32.totalorder %s19, 0
    %p109 = por %p107, %p108
    %s111 = sadd.s32 %s110, 1
    %p114 = scmp.eq.s32.totalorder %s13, 1
    %p115 = scmp.ne.s32.totalorder %s110, %s112
    %p116 = scmp.eq.s32.totalorder %s13, 0
    %p117 = por %p115, %p116
    %p118 = scmp.ne.s32.totalorder %s110, %s112
    %p119 = scmp.eq.s32.totalorder %s18, 1
    %p120 = por %p118, %p119
    %p121 = scmp.ne.s32.totalorder %s112, %s113
    %p122 = scmp.eq.s32.totalorder %s18, 0
    %p123 = por %p121, %p122
    %p124 = scmp.ne.s32.totalorder %s112, %s113
    %p125 = scmp.eq.s32.totalorder %s19, 1
    %p126 = por %p124, %p125
    %p128 = scmp.ne.s32.totalorder %s113, %s127
    %p129 = scmp.eq.s32.totalorder %s19, 0
    %p130 = por %p128, %p129
    %s132 = sadd.s32 %s131, 1
    %p135 = scmp.eq.s32.totalorder %s13, 1
    %p136 = scmp.ne.s32.totalorder %s131, %s133
    %p137 = scmp.eq.s32.totalorder %s13, 0
    %p138 = por %p136, %p137
    %p139 = scmp.ne.s32.totalorder %s131, %s133
    %p140 = scmp.eq.s32.totalorder %s18, 1
    %p141 = por %p139, %p140
    %p142 = scmp.ne.s32.totalorder %s133, %s134
    %p143 = scmp.eq.s32.totalorder %s18, 0
    %p144 = por %p142, %p143
    %p145 = scmp.ne.s32.totalorder %s133, %s134
    %p146 = scmp.eq.s32.totalorder %s19, 1
    %p147 = por %p145, %p146
    %p149 = scmp.ne.s32.totalorder %s134, %s148
    %p150 = scmp.eq.s32.totalorder %s19, 0
    %p151 = por %p149, %p150
    %s153 = sadd.s32 %s152, 1
    %p156 = scmp.eq.s32.totalorder %s13, 1
    %p157 = scmp.ne.s32.totalorder %s152, %s154
    %p158 = scmp.eq.s32.totalorder %s13, 0
    %p159 = por %p157, %p158
    %p160 = scmp.ne.s32.totalorder %s152, %s154
    %p161 = scmp.eq.s32.totalorder %s18, 1
    %p162 = por %p160, %p161
    %p163 = scmp.ne.s32.totalorder %s154, %s155
    %p164 = scmp.eq.s32.totalorder %s18, 0
    %p165 = por %p163, %p164
    %p166 = scmp.ne.s32.totalorder %s154, %s155
    %p167 = scmp.eq.s32.totalorder %s19, 1
    %p168 = por %p166, %p167
    %p170 = scmp.ne.s32.totalorder %s155, %s169
    %p171 = scmp.eq.s32.totalorder %s19, 0
    %p172 = por %p170, %p171
    %s173 = ssub.s32 %s13, %s20
    %p174 = scmp.eq.s32.totalorder %s173, 0
    %s176 = sadd.s32 %s175, 1
    %s177 = scalar_select %p174, %s175, %s176
    %p180 = pneg %p174
    %p181 = scmp.eq.s32.totalorder %s13, 1
    %p182 = por %p180, %p181
    %p183 = scmp.ne.s32.totalorder %s175, %s178
    %p184 = scmp.eq.s32.totalorder %s13, 0
    %p185 = por %p183, %p184
    %p186 = scmp.ne.s32.totalorder %s175, %s178
    %p187 = scmp.eq.s32.totalorder %s18, 1
    %p188 = por %p186, %p187
    %p189 = scmp.ne.s32.totalorder %s178, %s179
    %p190 = scmp.eq.s32.totalorder %s18, 0
    %p191 = por %p189, %p190
    %p192 = scmp.ne.s32.totalorder %s178, %s179
    %p193 = scmp.eq.s32.totalorder %s19, 1
    %p194 = por %p192, %p193
    %p196 = scmp.ne.s32.totalorder %s179, %s195
    %p197 = scmp.eq.s32.totalorder %s19, 0
    %p198 = por %p196, %p197
    %p199 = scmp.le.s32.totalorder 1, %s13
    %p200 = scmp.lt.s32.totalorder %s13, 3
    %p201 = pnand %p199, %p200
    %p202 = pneg %p201
    // Predicated region
    $region9: #{tpu_custom_call.1} parent=5 // pred_check
      _
    $region10: #{tpu_custom_call.1} parent=5 // pred_check_branch
      %204 = sbr.rel (%p201) target = $region12
    $region11: #{tpu_custom_call.1} parent=5 // pred_region
      %s205 = ssub.s32 %s13, 1
      // Predicated region
      $region13: #{tpu_custom_call.1} parent=11 // pred_check
        %p206 = pneg %p60
      $region14: #{tpu_custom_call.1} parent=11 // pred_check_branch
        %208 = sbr.rel (%p206) target = $region16
      $region15: #{tpu_custom_call.1} parent=11 // pred_region
        _
      $region16: #{tpu_custom_call.1} parent=11 // pred_fallthru
        _
      // Predicated region
      $region17: #{tpu_custom_call.1} parent=11 // pred_check
        %p209 = pneg %p81
      $region18: #{tpu_custom_call.1} parent=11 // pred_check_branch
        %211 = sbr.rel (%p209) target = $region20
      $region19: #{tpu_custom_call.1} parent=11 // pred_region
        _
      $region20: #{tpu_custom_call.1} parent=11 // pred_fallthru
        _
      // Predicated region
      $region21: #{tpu_custom_call.1} parent=11 // pred_check
        %p212 = pneg %p102
      $region22: #{tpu_custom_call.1} parent=11 // pred_check_branch
        %214 = sbr.rel (%p212) target = $region24
      $region23: #{tpu_custom_call.1} parent=11 // pred_region
        _
      $region24: #{tpu_custom_call.1} parent=11 // pred_fallthru
        _
      // Predicated region
      $region25: #{tpu_custom_call.1} parent=11 // pred_check
        %p215 = pneg %p123
      $region26: #{tpu_custom_call.1} parent=11 // pred_check_branch
        %217 = sbr.rel (%p215) target = $region28
      $region27: #{tpu_custom_call.1} parent=11 // pred_region
        _
      $region28: #{tpu_custom_call.1} parent=11 // pred_fallthru
        _
      // Predicated region
      $region29: #{tpu_custom_call.1} parent=11 // pred_check
        %p218 = pneg %p144
      $region30: #{tpu_custom_call.1} parent=11 // pred_check_branch
        %220 = sbr.rel (%p218) target = $region32
      $region31: #{tpu_custom_call.1} parent=11 // pred_region
        _
      $region32: #{tpu_custom_call.1} parent=11 // pred_fallthru
        _
      // Predicated region
      $region33: #{tpu_custom_call.1} parent=11 // pred_check
        %p221 = pneg %p165
      $region34: #{tpu_custom_call.1} parent=11 // pred_check_branch
        %223 = sbr.rel (%p221) target = $region36
      $region35: #{tpu_custom_call.1} parent=11 // pred_region
        _
      $region36: #{tpu_custom_call.1} parent=11 // pred_fallthru
        _
    $region12: #{tpu_custom_call.1} parent=5 // pred_fallthru
      _
    %p224 = scmp.lt.s32.totalorder %s13, 2
    // Predicated region
    $region37: #{tpu_custom_call.1} parent=5 // pred_check
      %p225 = pneg %p224
    $region38: #{tpu_custom_call.1} parent=5 // pred_check_branch
      %227 = sbr.rel (%p225) target = $region40
    $region39: #{tpu_custom_call.1} parent=5 // pred_region
      // Predicated region
      $region41: #{tpu_custom_call.1} parent=39 // pred_check
        %p228 = pneg %p33
      $region42: #{tpu_custom_call.1} parent=39 // pred_check_branch
        %230 = sbr.rel (%p228) target = $region44
      $region43: #{tpu_custom_call.1} parent=39 // pred_region
        %s231 = smul.u32 2, %s13
        %p232 = scmp.lt.s32.totalorder %s231, 3
        %s233 = scalar_select %p232, %s231, 3
        %s234 = smul.addr %s233, 8
        %s235 = scalar_lea.vmem %s0, %s234
        %s236 = smul.u32 2, %s13
      $region44: #{tpu_custom_call.1} parent=39 // pred_fallthru
        _
    $region40: #{tpu_custom_call.1} parent=5 // pred_fallthru
      _
    %p237 = scmp.le.s32.totalorder 1, %s13
    %p238 = scmp.lt.s32.totalorder %s13, 3
    %p239 = pnand %p237, %p238
    %p240 = pneg %p239
    // Predicated region
    $region45: #{tpu_custom_call.1} parent=5 // pred_check
      _
    $region46: #{tpu_custom_call.1} parent=5 // pred_check_branch
      %242 = sbr.rel (%p239) target = $region48
    $region47: #{tpu_custom_call.1} parent=5 // pred_region
      %s243 = ssub.s32 %s13, 1
      %s244 = smul.u32 2, %s18
      %p245 = scmp.lt.s32.totalorder %s244, 3
      %s246 = scalar_select %p245, %s244, 3
      %s247 = smul.addr %s246, 8
      %s248 = scalar_lea.vmem %s0, %s247
      %p249 = pneg %p39
      %p250 = pneg %p36
      %p251 = pneg %p60
      %p252 = pneg %p57
      %p253 = pneg %p81
      %p254 = pneg %p78
      %p255 = pneg %p102
      %p256 = pneg %p99
      %p257 = pneg %p123
      %p258 = pneg %p120
      %p259 = pneg %p144
      %p260 = pneg %p141
      %p261 = pneg %p165
      %p262 = pneg %p162
      %p263 = pneg %p191
      %p264 = pneg %p188
      %s265 = smul.u32 2, %s18
      %p266 = scmp.lt.s32.totalorder %s265, 3
      %s267 = scalar_select %p266, %s265, 3
      %s268 = smul.addr %s267, 8
      %s269 = scalar_lea.vmem %s7, %s268
      %s270 = smul.u32 2, %s18
      %p271 = scmp.lt.s32.totalorder %s270, 3
      %s272 = scalar_select %p271, %s270, 3
      %s273 = smul.addr %s272, 8
      %s274 = scalar_lea.vmem %s0, %s273
      %s275 = smul.u32 2, %s18
      %s276 = smul.u32 2, %s18
      %p277 = scmp.lt.s32.totalorder %s276, 3
      %s278 = scalar_select %p277, %s276, 3
      %s279 = smul.addr %s278, 8
      %s280 = scalar_lea.vmem %s7, %s279
      %s281 = smul.u32 2, %s18
      %v283 = vld [vmem:[%s274] sm:$0xff]
      %v284 = vld [vmem:[%s274 + $0x8] sm:$0xff]
      %v285 = vpack.c.bf16 %v284, %v283
      %v286 = vld [vmem:[%s1] sm:$0xf]
      %v287 = vld [vmem:[%s2] sm:$0x1]
      %v289 = vlaneseq
      %v290 = vshrl.u32 %v289, 7
      %v291 = vsub.s32 0, %v290
      %v292 = vrot.slane %v287, %v291
      %vm294 = vcmask 64512
      %v296 = vsel %vm294, %v285, 0
      %vm298 = vcmask 1043456
      %v300 = vsel %vm298, %v286, 0
      %302 = vmatprep.subr.bf16.mxu0 0
      %303 = vmatpush1.bf16.msra.mxu0 %v300
      %304 = vmatprep.subr.bf16.mxu0 0
      %305 = vmatpush1.bf16.msra.mxu0 0
      %306 = vmatprep.subr.bf16.mxu0 0
      %307 = vmatpush1.bf16.msra.mxu0 0
      %308 = vmatprep.subr.bf16.mxu0 0
      %309 = vmatpush1.bf16.msra.mxu0 0
      %310 = vmatprep.subr.bf16.mxu0 0
      %311 = vmatpush1.bf16.msra.mxu0 0
      %312 = vmatprep.subr.bf16.mxu0 0
      %313 = vmatpush1.bf16.msra.mxu0 0
      %314 = vmatprep.subr.bf16.mxu0 0
      %315 = vmatpush1.bf16.msra.mxu0 0
      %316 = vmatprep.subr.bf16.mxu0 0
      %317 = vmatpush1.bf16.msra.mxu0 0
      %318 = vmatprep.subr.bf16.mxu0 0
      %319 = vmatpush1.bf16.msra.mxu0 0
      %320 = vmatprep.subr.bf16.mxu0 0
      %321 = vmatpush1.bf16.msra.mxu0 0
      %322 = vmatprep.subr.bf16.mxu0 0
      %323 = vmatpush1.bf16.msra.mxu0 0
      %324 = vmatprep.subr.bf16.mxu0 0
      %325 = vmatpush1.bf16.msra.mxu0 0
      %326 = vmatprep.subr.bf16.mxu0 0
      %327 = vmatpush1.bf16.msra.mxu0 0
      %328 = vmatprep.subr.bf16.mxu0 0
      %329 = vmatpush1.bf16.msra.mxu0 0
      %330 = vmatprep.subr.bf16.mxu0 0
      %331 = vmatpush1.bf16.msra.mxu0 0
      %332 = vmatprep.subr.bf16.mxu0 0
      %333 = vmatpush1.bf16.msra.mxu0 0
      %334 = vmatprep.mubr.bf16.mxu0 0
      %335 = vmatmul.mubr.bf16.gmra.mrb[0].mxu0 %v296
      %v336 = vpop.f32.mrb[0].mxu0
      %v337 = vadd.f32 %v292, %v336
      %v338 = vpop.f32.mrb[0].mxu0
      %v339 = vpop.f32.mrb[0].mxu0
      %v340 = vadd.f32 %v292, %v339
      %v341 = vpop.f32.mrb[0].mxu0
      %342 = vdwg.mxu0
      %v343 = vmax.f32 %v337, 0.0
      %v344 = vmax.f32 %v340, 0.0
      %v345 = vpack.c.bf16 %v344, %v343
      %v346 = vld [vmem:[%s3] sm:$0xf]
      %v347 = vld [vmem:[%s3 + $0x4] sm:$0xf]
      %v348 = vld [vmem:[%s3 + $0x8] sm:$0xf]
      %v349 = vld [vmem:[%s3 + $0xc] sm:$0xf]
      %v350 = vld [vmem:[%s3 + $0x10] sm:$0xf]
      %v351 = vld [vmem:[%s3 + $0x14] sm:$0xf]
      %v352 = vld [vmem:[%s3 + $0x18] sm:$0xf]
      %v353 = vld [vmem:[%s3 + $0x1c] sm:$0xf]
      %v354 = vld [vmem:[%s3 + $0x20] sm:$0xf]
      %v355 = vld [vmem:[%s3 + $0x24] sm:$0xf]
      %v356 = vld [vmem:[%s3 + $0x28] sm:$0xf]
      %v357 = vld [vmem:[%s3 + $0x2c] sm:$0xf]
      %v358 = vld [vmem:[%s3 + $0x30] sm:$0xf]
      %v359 = vld [vmem:[%s3 + $0x34] sm:$0xf]
      %v360 = vld [vmem:[%s3 + $0x38] sm:$0xf]
      %v361 = vld [vmem:[%s3 + $0x3c] sm:$0xf]
      %v362 = vld [vmem:[%s4] sm:$0x1]
      %v364 = vlaneseq
      %v365 = vshrl.u32 %v364, 7
      %v366 = vsub.s32 0, %v365
      %v367 = vrot.slane %v362, %v366
      %v385 = vunpack.c.l.b16 %v346
      %v386 = vunpack.c.l.b16 %v347
      %v387 = vunpack.c.l.b16 %v348
      %v388 = vunpack.c.l.b16 %v349
      %v389 = vunpack.c.l.b16 %v350
      %v390 = vunpack.c.l.b16 %v351
      %v391 = vunpack.c.l.b16 %v352
      %v392 = vunpack.c.l.b16 %v353
      %v393 = vunpack.c.l.b16 %v354
      %v394 = vunpack.c.l.b16 %v355
      %v395 = vunpack.c.l.b16 %v356
      %v396 = vunpack.c.l.b16 %v357
      %v397 = vunpack.c.l.b16 %v358
      %v398 = vunpack.c.l.b16 %v359
      %v399 = vunpack.c.l.b16 %v360
      %v400 = vunpack.c.l.b16 %v361
      %v401 = vpack.c.b16 %v386, %v385
      %v402 = vpack.c.b16 %v388, %v387
      %v403 = vpack.c.b16 %v390, %v389
      %v404 = vpack.c.b16 %v392, %v391
      %v405 = vpack.c.b16 %v394, %v393
      %v406 = vpack.c.b16 %v396, %v395
      %v407 = vpack.c.b16 %v398, %v397
      %v408 = vpack.c.b16 %v400, %v399
      %417 = vmatprep.subr.bf16.mxu0 0
      %418 = vmatpush1.bf16.msra.mxu0 %v401
      %419 = vmatprep.subr.bf16.mxu0 0
      %420 = vmatpush1.bf16.msra.mxu0 %v402
      %421 = vmatprep.subr.bf16.mxu0 0
      %422 = vmatpush1.bf16.msra.mxu0 %v403
      %423 = vmatprep.subr.bf16.mxu0 0
      %424 = vmatpush1.bf16.msra.mxu0 %v404
      %425 = vmatprep.subr.bf16.mxu0 0
      %426 = vmatpush1.bf16.msra.mxu0 %v405
      %427 = vmatprep.subr.bf16.mxu0 0
      %428 = vmatpush1.bf16.msra.mxu0 %v406
      %429 = vmatprep.subr.bf16.mxu0 0
      %430 = vmatpush1.bf16.msra.mxu0 %v407
      %431 = vmatprep.subr.bf16.mxu0 0
      %432 = vmatpush1.bf16.msra.mxu0 %v408
      %433 = vmatprep.subr.bf16.mxu0 0
      %434 = vmatpush1.bf16.msra.mxu0 0
      %435 = vmatprep.subr.bf16.mxu0 0
      %436 = vmatpush1.bf16.msra.mxu0 0
      %437 = vmatprep.subr.bf16.mxu0 0
      %438 = vmatpush1.bf16.msra.mxu0 0
      %439 = vmatprep.subr.bf16.mxu0 0
      %440 = vmatpush1.bf16.msra.mxu0 0
      %441 = vmatprep.subr.bf16.mxu0 0
      %442 = vmatpush1.bf16.msra.mxu0 0
      %443 = vmatprep.subr.bf16.mxu0 0
      %444 = vmatpush1.bf16.msra.mxu0 0
      %445 = vmatprep.subr.bf16.mxu0 0
      %446 = vmatpush1.bf16.msra.mxu0 0
      %447 = vmatprep.subr.bf16.mxu0 0
      %448 = vmatpush1.bf16.msra.mxu0 0
      %449 = vmatprep.mubr.bf16.mxu0 0
      %450 = vmatmul.mubr.bf16.gmra.mrb[0].mxu0 %v345
      %v451 = vpop.f32.mrb[0].mxu0
      %v452 = vadd.f32 %v367, %v451
      %v453 = vpop.f32.mrb[0].mxu0
      %v454 = vpop.f32.mrb[0].mxu0
      %v455 = vadd.f32 %v367, %v454
      %v456 = vpop.f32.mrb[0].mxu0
      %457 = vdwg.mxu0
      %v458 = vmax.f32 %v452, 0.0
      %v459 = vmax.f32 %v455, 0.0
      %v460 = vpack.c.bf16 %v459, %v458
      %v461 = vld [vmem:[%s5] sm:$0xf]
      %v462 = vld [vmem:[%s5 + $0x4] sm:$0xf]
      %v463 = vld [vmem:[%s5 + $0x8] sm:$0xf]
      %v464 = vld [vmem:[%s5 + $0xc] sm:$0xf]
      %v465 = vld [vmem:[%s5 + $0x10] sm:$0xf]
      %v466 = vld [vmem:[%s5 + $0x14] sm:$0xf]
      %v467 = vld [vmem:[%s5 + $0x18] sm:$0xf]
      %v468 = vld [vmem:[%s5 + $0x1c] sm:$0xf]
      %v469 = vld [vmem:[%s5 + $0x20] sm:$0xf]
      %v470 = vld [vmem:[%s5 + $0x24] sm:$0xf]
      %v471 = vld [vmem:[%s5 + $0x28] sm:$0xf]
      %v472 = vld [vmem:[%s5 + $0x2c] sm:$0xf]
      %v473 = vld [vmem:[%s5 + $0x30] sm:$0xf]
      %v474 = vld [vmem:[%s5 + $0x34] sm:$0xf]
      %v475 = vld [vmem:[%s5 + $0x38] sm:$0xf]
      %v476 = vld [vmem:[%s5 + $0x3c] sm:$0xf]
      %v477 = vld [vmem:[%s6] sm:$0x1]
      %v479 = vlaneseq
      %v480 = vshrl.u32 %v479, 7
      %v481 = vsub.s32 0, %v480
      %v482 = vrot.slane %v477, %v481
      %v500 = vunpack.c.l.b16 %v461
      %v501 = vunpack.c.l.b16 %v462
      %v502 = vunpack.c.l.b16 %v463
      %v503 = vunpack.c.l.b16 %v464
      %v504 = vunpack.c.l.b16 %v465
      %v505 = vunpack.c.l.b16 %v466
      %v506 = vunpack.c.l.b16 %v467
      %v507 = vunpack.c.l.b16 %v468
      %v508 = vunpack.c.l.b16 %v469
      %v509 = vunpack.c.l.b16 %v470
      %v510 = vunpack.c.l.b16 %v471
      %v511 = vunpack.c.l.b16 %v472
      %v512 = vunpack.c.l.b16 %v473
      %v513 = vunpack.c.l.b16 %v474
      %v514 = vunpack.c.l.b16 %v475
      %v515 = vunpack.c.l.b16 %v476
      %v516 = vpack.c.b16 %v501, %v500
      %v517 = vpack.c.b16 %v503, %v502
      %v518 = vpack.c.b16 %v505, %v504
      %v519 = vpack.c.b16 %v507, %v506
      %v520 = vpack.c.b16 %v509, %v508
      %v521 = vpack.c.b16 %v511, %v510
      %v522 = vpack.c.b16 %v513, %v512
      %v523 = vpack.c.b16 %v515, %v514
      %532 = vmatprep.subr.bf16.mxu0 0
      %533 = vmatpush1.bf16.msra.mxu0 %v516
      %534 = vmatprep.subr.bf16.mxu0 0
      %535 = vmatpush1.bf16.msra.mxu0 %v517
      %536 = vmatprep.subr.bf16.mxu0 0
      %537 = vmatpush1.bf16.msra.mxu0 %v518
      %538 = vmatprep.subr.bf16.mxu0 0
      %539 = vmatpush1.bf16.msra.mxu0 %v519
      %540 = vmatprep.subr.bf16.mxu0 0
      %541 = vmatpush1.bf16.msra.mxu0 %v520
      %542 = vmatprep.subr.bf16.mxu0 0
      %543 = vmatpush1.bf16.msra.mxu0 %v521
      %544 = vmatprep.subr.bf16.mxu0 0
      %545 = vmatpush1.bf16.msra.mxu0 %v522
      %546 = vmatprep.subr.bf16.mxu0 0
      %547 = vmatpush1.bf16.msra.mxu0 %v523
      %548 = vmatprep.subr.bf16.mxu0 0
      %549 = vmatpush1.bf16.msra.mxu0 0
      %550 = vmatprep.subr.bf16.mxu0 0
      %551 = vmatpush1.bf16.msra.mxu0 0
      %552 = vmatprep.subr.bf16.mxu0 0
      %553 = vmatpush1.bf16.msra.mxu0 0
      %554 = vmatprep.subr.bf16.mxu0 0
      %555 = vmatpush1.bf16.msra.mxu0 0
      %556 = vmatprep.subr.bf16.mxu0 0
      %557 = vmatpush1.bf16.msra.mxu0 0
      %558 = vmatprep.subr.bf16.mxu0 0
      %559 = vmatpush1.bf16.msra.mxu0 0
      %560 = vmatprep.subr.bf16.mxu0 0
      %561 = vmatpush1.bf16.msra.mxu0 0
      %562 = vmatprep.subr.bf16.mxu0 0
      %563 = vmatpush1.bf16.msra.mxu0 0
      %564 = vmatprep.mubr.bf16.mxu0 0
      %565 = vmatmul.mubr.bf16.gmra.mrb[0].mxu0 %v460
      %v566 = vpop.f32.mrb[0].mxu0
      %v567 = vadd.f32 %v482, %v566
      %v568 = vpop.f32.mrb[0].mxu0
      %v569 = vpop.f32.mrb[0].mxu0
      %v570 = vadd.f32 %v482, %v569
      %v571 = vpop.f32.mrb[0].mxu0
      %572 = vdwg.mxu0
      %vm573 = vcmask 31744
      %574 = vst.msk [vmem:[%s280] sm:$0xff] %vm573, %v567
      %575 = vst.msk [vmem:[%s280 + $0x8] sm:$0xff] %vm573, %v570
      %s576 = smul.u32 2, %s18
      %p577 = scmp.lt.s32.totalorder %s576, 3
      %s578 = scalar_select %p577, %s576, 3
      %s579 = smul.addr %s578, 8
      %s580 = scalar_lea.vmem %s7, %s579
      // Predicated region
      $region49: #{tpu_custom_call.1} parent=47 // pred_check
        %p581 = pneg %p188
      $region50: #{tpu_custom_call.1} parent=47 // pred_check_branch
        %583 = sbr.rel (%p581) target = $region52
      $region51: #{tpu_custom_call.1} parent=47 // pred_region
        %s584 = smul.u32 2, %s18
      $region52: #{tpu_custom_call.1} parent=47 // pred_fallthru
        _
    $region48: #{tpu_custom_call.1} parent=5 // pred_fallthru
      _
    %p585 = scmp.le.s32.totalorder 2, %s13
    // Predicated region
    $region53: #{tpu_custom_call.1} parent=5 // pred_check
      %p586 = pneg %p585
    $region54: #{tpu_custom_call.1} parent=5 // pred_check_branch
      %588 = sbr.rel (%p586) target = $region56
    $region55: #{tpu_custom_call.1} parent=5 // pred_region
      %s589 = ssub.s32 %s13, 2
      // Predicated region
      $region57: #{tpu_custom_call.1} parent=55 // pred_check
        %p590 = pneg %p194
      $region58: #{tpu_custom_call.1} parent=55 // pred_check_branch
        %592 = sbr.rel (%p590) target = $region60
      $region59: #{tpu_custom_call.1} parent=55 // pred_region
        %s593 = smul.u32 2, %s19
        %p594 = scmp.lt.s32.totalorder %s593, 3
        %s595 = scalar_select %p594, %s593, 3
        %s596 = smul.addr %s595, 8
        %s597 = scalar_lea.vmem %s7, %s596
      $region60: #{tpu_custom_call.1} parent=55 // pred_fallthru
        _
    $region56: #{tpu_custom_call.1} parent=5 // pred_fallthru
      _
  $region6: #{tpu_custom_call.1} parent=0 // loop_footer
    %s17 = sadd.s32 1, %s13
  $region7: #{tpu_custom_call.1} parent=0 // loop_footer_branch
    %12 = sbr.rel target = $region3
  $region8: #{tpu_custom_call.1} parent=0 // loop_exit
    _

</llo_original>
